<compile_context>
chip_gen: v7x
topology: tpu7x:2x2x1
jax: 0.10.0
libtpu: 0.0.40
codegen_flags: <defaults>
</compile_context>

<pallas_src>
import jax
import jax.numpy as jnp
from jax.experimental import pallas as pl
from jax.experimental.pallas import tpu as pltpu


def patch_embed_kernel(p_ref, w_ref, pos_ref, out_ref):
    # p_ref:   (1, TM, K)  row tile of zero-row-prefixed flattened patches
    # w_ref:   (K, E)      projection weight, constant index -> VMEM-resident
    # pos_ref: (Spad, E)   pos table (row 0 = cls + pos[0]; rows >= 1 include
    #                      the conv bias), constant index -> VMEM-resident
    # out_ref: (1, TM, E)  aligned output row tile for one batch element
    m = pl.program_id(1)
    tm = out_ref.shape[1]

    # (TM, K) x (K, E) -> (TM, E), f32 accumulation on the MXU.
    proj = jnp.dot(p_ref[0], w_ref[...], preferred_element_type=jnp.float32)

    r0 = m * tm
    if tm % 8 == 0:
        r0 = pl.multiple_of(r0, 8)
    proj = proj + pos_ref[pl.ds(r0, tm), :].astype(jnp.float32)

    out_ref[0, :, :] = proj.astype(out_ref.dtype)


def patch_embedding(x, conv_w, conv_b, cls_token, pos_embed, patch_size):
    """x: (B, C, H, W).  Returns (B, 1 + num_patches, embed_dim) in x.dtype."""
    B, C, H, W = x.shape
    P = patch_size
    Hp, Wp = H // P, W // P
    N = Hp * Wp
    E = conv_w.shape[0]
    K = C * P * P
    S = 1 + N
    compute_dtype = x.dtype

    # Patch extraction in (c, ph, pw) order + one leading zero row (the cls
    # slot contributes 0 @ W).  With allow_input_fusion this relayout can be
    # fused into the Pallas input DMA instead of a separate HBM pass.
    # TODO(synk): a fully in-kernel gather of patch row-bands straight from x
    # would remove the relayout even without XLA fusion.
    patches = x.reshape(B, C, Hp, P, Wp, P)
    patches = patches.transpose(0, 2, 4, 1, 3, 5).reshape(B, N, K)
    patches = jnp.pad(patches, ((0, 0), (1, 0), (0, 0)))          # (B, S, K)

    # Weight as (K, E): one-time wrapper transpose, canonical contraction.
    w_ke = conv_w.reshape(E, K).T.astype(compute_dtype)

    # Positional table: row 0 = cls_token + pos[0]; rows 1.. = pos[1..] + bias.
    pos = pos_embed.reshape(S, E).astype(jnp.float32)
    pos_full = jnp.concatenate(
        [cls_token.reshape(1, E).astype(jnp.float32) + pos[0:1],
         pos[1:] + conv_b.astype(jnp.float32)[None, :]],
        axis=0,
    ).astype(compute_dtype)                                       # (S, E)

    # Row tile: 256 (MXU-sized, multiple of 8/16) for long sequences, else the
    # full sequence (block dim == array dim is always legal).
    TM = S if S <= 256 else 256
    Ms = pl.cdiv(S, TM)
    Spad = Ms * TM
    if Spad != S:
        # Tiny pad so the in-kernel pl.ds slice of the resident pos table is
        # always in bounds; ragged output/patch tiles are masked by Pallas.
        pos_full = jnp.pad(pos_full, ((0, Spad - S), (0, 0)))

    out = pl.pallas_call(
        patch_embed_kernel,
        out_shape=jax.ShapeDtypeStruct((B, S, E), compute_dtype),
        grid_spec=pltpu.PrefetchScalarGridSpec(
            num_scalar_prefetch=0,
            grid=(B, Ms),
            in_specs=[
                pl.BlockSpec((1, TM, K), lambda b, m: (b, m, 0)),
                pl.BlockSpec((K, E), lambda b, m: (0, 0)),
                pl.BlockSpec((Spad, E), lambda b, m: (0, 0)),
            ],
            out_specs=pl.BlockSpec((1, TM, E), lambda b, m: (b, m, 0)),
        ),
        compiler_params=pltpu.CompilerParams(
            # Every (b, m) output block is written exactly once -> both axes
            # parallel (lets v7x shard the grid across its 2 TensorCores).
            dimension_semantics=("parallel", "parallel"),
            # Allow XLA to fuse the patchify relayout into the patch DMA.
            allow_input_fusion=[True, False, False],
        ),
    )(patches, w_ke, pos_full)
    return out


def _reference(x, conv_w, conv_b, cls_token, pos_embed, patch_size):
    """Pure-JAX reference mirroring the PyTorch forward."""
    B = x.shape[0]
    E = conv_w.shape[0]
    y = jax.lax.conv_general_dilated(
        x, conv_w,
        window_strides=(patch_size, patch_size),
        padding="VALID",
        dimension_numbers=("NCHW", "OIHW", "NCHW"),
    ) + conv_b.reshape(1, E, 1, 1)
    y = y.reshape(B, E, -1).transpose(0, 2, 1)              # (B, N, E)
    cls = jnp.broadcast_to(cls_token, (B, 1, E))
    y = jnp.concatenate([cls, y], axis=1) + pos_embed
    return y


if __name__ == "__main__":
    # Small, self-consistent config: img 16x16, 4 channels, 4x4 patches -> 16 patches
    img_size, patch_size, in_channels, embed_dim = 16, 4, 4, 32
    num_patches = (img_size // patch_size) ** 2
    B = 2

    key = jax.random.PRNGKey(0)
    kx, kw, kb, kc, kp = jax.random.split(key, 5)
    x = jax.random.normal(kx, (B, in_channels, img_size, img_size), jnp.float32)
    conv_w = jax.random.normal(
        kw, (embed_dim, in_channels, patch_size, patch_size), jnp.float32) * 0.1
    conv_b = jax.random.normal(kb, (embed_dim,), jnp.float32) * 0.1
    cls_token = jax.random.normal(kc, (1, 1, embed_dim), jnp.float32)
    pos_embed = jax.random.normal(kp, (1, 1 + num_patches, embed_dim), jnp.float32)

    fn = jax.jit(patch_embedding, static_argnames=("patch_size",))
    out = fn(x, conv_w, conv_b, cls_token, pos_embed, patch_size=patch_size)
    out = jax.block_until_ready(out)

    ref = _reference(x, conv_w, conv_b, cls_token, pos_embed, patch_size)
    assert out.shape == (B, 1 + num_patches, embed_dim)
    assert jnp.allclose(out, ref, atol=1e-4, rtol=1e-4)

    print("KERNEL_OK")
</pallas_src>

<mosaic_0001>
module attributes {stable_mosaic.version = 11 : i64} {
  func.func @patch_embed_kernel(%arg0: i32, %arg1: i32, %arg2: memref<1x17x64xf32, #tpu.memory_space<vmem>>, %arg3: memref<64x32xf32, #tpu.memory_space<vmem>>, %arg4: memref<17x32xf32, #tpu.memory_space<vmem>>, %arg5: memref<1x17x32xf32, #tpu.memory_space<vmem>>) attributes {dimension_semantics = [#tpu.dimension_semantics<parallel>, #tpu.dimension_semantics<parallel>], iteration_bounds = array<i64: 2, 1>, scalar_prefetch = 0 : i64, scratch_operands = 0 : i64, tpu.core_type = #tpu.core_type<tc>, window_params = [{transform_indices = @transform_0, window_bounds = array<i64: 1, 17, 64>}, {pipeline_mode = #tpu.pipeline_mode<synchronous>, transform_indices = @transform_1, window_bounds = array<i64: 64, 32>}, {pipeline_mode = #tpu.pipeline_mode<synchronous>, transform_indices = @transform_2, window_bounds = array<i64: 17, 32>}, {transform_indices = @transform_3, window_bounds = array<i64: 1, 17, 32>}]} {
    %c0 = arith.constant 0 : index
    %c0_0 = arith.constant 0 : index
    %c0_1 = arith.constant 0 : index
    %0 = vector.load %arg2[%c0, %c0_0, %c0_1] : memref<1x17x64xf32, #tpu.memory_space<vmem>>, vector<1x17x64xf32>
    %1 = vector.shape_cast %0 : vector<1x17x64xf32> to vector<17x64xf32>
    %c0_2 = arith.constant 0 : index
    %c0_3 = arith.constant 0 : index
    %2 = vector.load %arg3[%c0_2, %c0_3] : memref<64x32xf32, #tpu.memory_space<vmem>>, vector<64x32xf32>
    %cst = arith.constant dense<0.000000e+00> : vector<17x32xf32>
    %3 = tpu.matmul %1, %2, %cst {dimension_numbers = #tpu.dot_dimension_numbers<[1], [0], [0], [1], [0, 0, 1, 1], [], []>} : vector<17x64xf32>, vector<64x32xf32>, vector<17x32xf32> -> vector<17x32xf32>
    %c17_i32 = arith.constant 17 : i32
    %4 = arith.muli %arg1, %c17_i32 : i32
    %5 = arith.index_cast %4 : i32 to index
    %c0_4 = arith.constant 0 : index
    %6 = vector.load %arg4[%5, %c0_4] : memref<17x32xf32, #tpu.memory_space<vmem>>, vector<17x32xf32>
    %7 = arith.addf %3, %6 : vector<17x32xf32>
    %c0_5 = arith.constant 0 : index
    %c0_6 = arith.constant 0 : index
    %c0_7 = arith.constant 0 : index
    %8 = vector.load %arg5[%c0_5, %c0_6, %c0_7] : memref<1x17x32xf32, #tpu.memory_space<vmem>>, vector<1x17x32xf32>
    %9 = vector.shape_cast %8 : vector<1x17x32xf32> to vector<17x32xf32>
    %10 = vector.shape_cast %7 : vector<17x32xf32> to vector<1x17x32xf32>
    tpu.vector_store %arg5[%c0_5, %c0_6, %c0_7], %10 {strides = array<i32>} : memref<1x17x32xf32, #tpu.memory_space<vmem>>, vector<1x17x32xf32>,
    return
  }
  func.func @transform_0(%arg0: i32, %arg1: i32) -> (i32, i32, i32) {
    %c0_i32 = arith.constant 0 : i32
    %c0_i32_0 = arith.constant 0 : i32
    return %arg0, %arg1, %c0_i32 : i32, i32, i32
  }
  func.func @transform_1(%arg0: i32, %arg1: i32) -> (i32, i32) {
    %c0_i32 = arith.constant 0 : i32
    %c0_i32_0 = arith.constant 0 : i32
    %c0_i32_1 = arith.constant 0 : i32
    return %c0_i32, %c0_i32_0 : i32, i32
  }
  func.func @transform_2(%arg0: i32, %arg1: i32) -> (i32, i32) {
    %c0_i32 = arith.constant 0 : i32
    %c0_i32_0 = arith.constant 0 : i32
    %c0_i32_1 = arith.constant 0 : i32
    return %c0_i32, %c0_i32_0 : i32, i32
  }
  func.func @transform_3(%arg0: i32, %arg1: i32) -> (i32, i32, i32) {
    %c0_i32 = arith.constant 0 : i32
    %c0_i32_0 = arith.constant 0 : i32
    return %arg0, %arg1, %c0_i32 : i32, i32, i32
  }
}

</mosaic_0001>

<llo_original>
// kernel: patch_embedding.2
$region0: #{patch_embedding.2}
  #allocation0 [shape = 'u32[]', space=smem, size = 0x4, offset = 0x4, fixed_abs, tag = 'smem constant byte address 0x4 - core index']
  #allocation1 [shape = 'u32[144,128]{1,0:T(1,128)}', space=vmem, size = 0x12000, scoped, tag = 'internal scratch']
  #allocation2 [shape = 'u32[2048]{0}', space=vmem, size = 0x2000, scoped, tag = 'scoped memory for patch_embedding.2']
  #allocation3 [shape = 'u32[2048]{0}', space=vmem, size = 0x2000, scoped, tag = 'scoped memory for patch_embedding.2']
  #allocation4 [shape = 'u32[2048]{0}', space=vmem, size = 0x2000, scoped, tag = 'scoped memory for patch_embedding.2']
  #allocation5 [shape = 'u32[2048]{0}', space=vmem, size = 0x2000, scoped, tag = 'scoped memory for patch_embedding.2']
  #allocation6 [shape = 'u32[2048]{0}', space=vmem, size = 0x2000, scoped, tag = 'scoped memory for patch_embedding.2']
  %s0 = inlined_call_operand.vmem [shape: f32[64,32], index: 0, kind: input, shape index: {}]
  %s1 = inlined_call_operand.vmem [shape: f32[17,32], index: 1, kind: input, shape index: {}]
  %s2 = inlined_call_operand.vmem [shape: f32[2,16,64], index: 2, kind: input, shape index: {}]
  %s3 = inlined_call_operand.<no memory space> [shape: f32[], index: 3, kind: input, shape index: {}]
  %s4 = inlined_call_operand.vmem [shape: f32[2,17,32], index: 4, kind: output, shape index: {}]
  %s5 = sld [smem:[#allocation0]]
  $region45: #{patch_embedding.2} parent=0
    _
  %s7 = ssub.s32 1, %s5
  %s8 = scalar_select 0, %s7, %s5
  %v9 = vstv %s3
  loop: start=0, step=1, limit=4
  $region2: #{patch_embedding.2} parent=0 // loop_pre_header
    _
  $region3: #{patch_embedding.2} parent=0 // loop_header
    %s11 = sphi 0, %s15
    %p12 = scmp.ge.s32.totalorder %s11, 4
    %s18 = sphi 0, %s30
    %s19 = sphi 0, %s26
    %s20 = sphi 0, %s18
    %s21 = sphi 0, %s19
    %s22 = sphi 0, %s20
    %s23 = sphi 0, %s21
    %s35 = sphi 0, %s37
    %s38 = sphi 0, %s35
    %s39 = sphi 0, %s38
    %s55 = sphi 0, %s39
    %s59 = sphi 0, %s59
    %s61 = sphi 0, %s59
    %s62 = sphi 0, %s61
    %s76 = sphi 0, %s62
    %s80 = sphi 0, %s80
    %s82 = sphi 0, %s80
    %s83 = sphi 0, %s82
    %s97 = sphi 0, %s83
    %s105 = sphi 0, %s107
    %s108 = sphi 0, %s105
    %s109 = sphi 0, %s108
    %s125 = sphi 0, %s109
  $region4: #{patch_embedding.2} parent=0 // loop_header_branch
    %14 = sbr.rel (%p12) target = $region8
  $region5: #{patch_embedding.2} parent=0 // loop_body
    %s16 = ssub.s32 %s11, 1
    %s17 = ssub.s32 %s11, 2
    %s24 = sadd.s32 1, %s19
    %p25 = scmp.ge.s32.totalorder %s24, 1
    %s26 = scalar_select %p25, 0, %s24
    %s27 = sadd.s32 1, %s18
    %s28 = scalar_select %p25, %s27, %s18
    %p29 = scmp.ge.s32.totalorder %s28, 2
    %s30 = scalar_select %p29, 0, %s28
    %s31 = ssub.s32 %s18, %s30
    %s32 = ssub.s32 %s19, %s26
    %s33 = sor.u32 %s31, %s32
    %p34 = scmp.eq.s32.totalorder %s33, 0
    %s36 = sadd.s32 %s35, 1
    %s37 = scalar_select %p34, %s35, %s36
    %p40 = pneg %p34
    %p41 = scmp.eq.s32.totalorder %s11, 1
    %p42 = por %p40, %p41
    %p43 = scmp.ne.s32.totalorder %s35, %s38
    %p44 = scmp.eq.s32.totalorder %s11, 0
    %p45 = por %p43, %p44
    %p46 = scmp.ne.s32.totalorder %s35, %s38
    %p47 = scmp.eq.s32.totalorder %s16, 1
    %p48 = por %p46, %p47
    %p49 = scmp.ne.s32.totalorder %s38, %s39
    %p50 = scmp.eq.s32.totalorder %s16, 0
    %p51 = por %p49, %p50
    %p52 = scmp.ne.s32.totalorder %s38, %s39
    %p53 = scmp.eq.s32.totalorder %s17, 1
    %p54 = por %p52, %p53
    %p56 = scmp.ne.s32.totalorder %s39, %s55
    %p57 = scmp.eq.s32.totalorder %s17, 0
    %p58 = por %p56, %p57
    %s60 = sadd.s32 %s59, 1
    %p63 = scmp.eq.s32.totalorder %s11, 1
    %p64 = scmp.ne.s32.totalorder %s59, %s61
    %p65 = scmp.eq.s32.totalorder %s11, 0
    %p66 = por %p64, %p65
    %p67 = scmp.ne.s32.totalorder %s59, %s61
    %p68 = scmp.eq.s32.totalorder %s16, 1
    %p69 = por %p67, %p68
    %p70 = scmp.ne.s32.totalorder %s61, %s62
    %p71 = scmp.eq.s32.totalorder %s16, 0
    %p72 = por %p70, %p71
    %p73 = scmp.ne.s32.totalorder %s61, %s62
    %p74 = scmp.eq.s32.totalorder %s17, 1
    %p75 = por %p73, %p74
    %p77 = scmp.ne.s32.totalorder %s62, %s76
    %p78 = scmp.eq.s32.totalorder %s17, 0
    %p79 = por %p77, %p78
    %s81 = sadd.s32 %s80, 1
    %p84 = scmp.eq.s32.totalorder %s11, 1
    %p85 = scmp.ne.s32.totalorder %s80, %s82
    %p86 = scmp.eq.s32.totalorder %s11, 0
    %p87 = por %p85, %p86
    %p88 = scmp.ne.s32.totalorder %s80, %s82
    %p89 = scmp.eq.s32.totalorder %s16, 1
    %p90 = por %p88, %p89
    %p91 = scmp.ne.s32.totalorder %s82, %s83
    %p92 = scmp.eq.s32.totalorder %s16, 0
    %p93 = por %p91, %p92
    %p94 = scmp.ne.s32.totalorder %s82, %s83
    %p95 = scmp.eq.s32.totalorder %s17, 1
    %p96 = por %p94, %p95
    %p98 = scmp.ne.s32.totalorder %s83, %s97
    %p99 = scmp.eq.s32.totalorder %s17, 0
    %p100 = por %p98, %p99
    %s101 = ssub.s32 %s18, %s30
    %s102 = ssub.s32 %s19, %s26
    %s103 = sor.u32 %s101, %s102
    %p104 = scmp.eq.s32.totalorder %s103, 0
    %s106 = sadd.s32 %s105, 1
    %s107 = scalar_select %p104, %s105, %s106
    %p110 = pneg %p104
    %p111 = scmp.eq.s32.totalorder %s11, 1
    %p112 = por %p110, %p111
    %p113 = scmp.ne.s32.totalorder %s105, %s108
    %p114 = scmp.eq.s32.totalorder %s11, 0
    %p115 = por %p113, %p114
    %p116 = scmp.ne.s32.totalorder %s105, %s108
    %p117 = scmp.eq.s32.totalorder %s16, 1
    %p118 = por %p116, %p117
    %p119 = scmp.ne.s32.totalorder %s108, %s109
    %p120 = scmp.eq.s32.totalorder %s16, 0
    %p121 = por %p119, %p120
    %p122 = scmp.ne.s32.totalorder %s108, %s109
    %p123 = scmp.eq.s32.totalorder %s17, 1
    %p124 = por %p122, %p123
    %p126 = scmp.ne.s32.totalorder %s109, %s125
    %p127 = scmp.eq.s32.totalorder %s17, 0
    %p128 = por %p126, %p127
    %p129 = scmp.le.s32.totalorder 1, %s11
    %p130 = scmp.lt.s32.totalorder %s11, 3
    %p131 = pnand %p129, %p130
    %p132 = pneg %p131
    // Predicated region
    $region9: #{patch_embedding.2} parent=5 // pred_check
      _
    $region10: #{patch_embedding.2} parent=5 // pred_check_branch
      %134 = sbr.rel (%p131) target = $region12
    $region11: #{patch_embedding.2} parent=5 // pred_region
      %s135 = ssub.s32 %s11, 1
      // Predicated region
      $region13: #{patch_embedding.2} parent=11 // pred_check
        %p136 = pneg %p72
      $region14: #{patch_embedding.2} parent=11 // pred_check_branch
        %138 = sbr.rel (%p136) target = $region16
      $region15: #{patch_embedding.2} parent=11 // pred_region
        _
      $region16: #{patch_embedding.2} parent=11 // pred_fallthru
        _
      // Predicated region
      $region17: #{patch_embedding.2} parent=11 // pred_check
        %p139 = pneg %p93
      $region18: #{patch_embedding.2} parent=11 // pred_check_branch
        %141 = sbr.rel (%p139) target = $region20
      $region19: #{patch_embedding.2} parent=11 // pred_region
        _
      $region20: #{patch_embedding.2} parent=11 // pred_fallthru
        _
    $region12: #{patch_embedding.2} parent=5 // pred_fallthru
      _
    %p142 = scmp.lt.s32.totalorder %s11, 2
    // Predicated region
    $region21: #{patch_embedding.2} parent=5 // pred_check
      %p143 = pneg %p142
    $region22: #{patch_embedding.2} parent=5 // pred_check_branch
      %145 = sbr.rel (%p143) target = $region24
    $region23: #{patch_embedding.2} parent=5 // pred_region
      // Predicated region
      $region25: #{patch_embedding.2} parent=23 // pred_check
        %p146 = pneg %p45
      $region26: #{patch_embedding.2} parent=23 // pred_check_branch
        %148 = sbr.rel (%p146) target = $region28
      $region27: #{patch_embedding.2} parent=23 // pred_region
        %s149 = smul.u32 3, %s19
        %s150 = ssub.s32 1, %s149
        %s151 = ssub.s32 3, %s150
        %s152 = smul.u32 128, %s151
        %p153 = scmp.lt.s32.totalorder %s18, 1
        %s154 = scalar_select %p153, %s18, 1
        %s155 = ssub.s32 %s149, 1
        %p156 = scmp.lt.s32.totalorder %s155, 1
        %s157 = scalar_select %p156, %s155, 1
        %s158 = smul.addr %s154, 2
        %s159 = sadd.s32 %s157, %s158
        %s160 = smul.addr %s159, 8
        %s161 = scalar_lea.vmem %s2, %s160
        %s162 = smul.u32 3, %s19
        %s163 = ssub.s32 1, %s162
        %s164 = ssub.s32 3, %s163
        %s165 = smul.u32 128, %s164
      $region28: #{patch_embedding.2} parent=23 // pred_fallthru
        _
    $region24: #{patch_embedding.2} parent=5 // pred_fallthru
      _
    %p166 = scmp.le.s32.totalorder 1, %s11
    %p167 = scmp.lt.s32.totalorder %s11, 3
    %p168 = pnand %p166, %p167
    %p169 = pneg %p168
    // Predicated region
    $region29: #{patch_embedding.2} parent=5 // pred_check
      _
    $region30: #{patch_embedding.2} parent=5 // pred_check_branch
      %171 = sbr.rel (%p168) target = $region32
    $region31: #{patch_embedding.2} parent=5 // pred_region
      #allocation7 [shape = 'u8[12288]{0}', space=vmem, size = 0x3000, dematerialized = true, scoped, tag = 'FusionAdapter Buffer %fusion.1 = f32[2,17,64]{2,1,0:T(8,128)} fusion(%param_2.1, %param_3), kind=kLoop, calls=%fused_computation.2.clone, metadata={op_name="jit(patch_embedding)/jit(_pad)/pad" stack_frame_id=9}']
      %s172 = ssub.s32 %s11, 1
      %s173 = smul.u32 3, %s21
      %s174 = ssub.s32 1, %s173
      %s175 = ssub.s32 3, %s174
      %s176 = smul.u32 128, %s175
      %p177 = scmp.lt.s32.totalorder %s20, 1
      %s178 = scalar_select %p177, %s20, 1
      %s179 = ssub.s32 %s173, 1
      %p180 = scmp.lt.s32.totalorder %s179, 1
      %s181 = scalar_select %p180, %s179, 1
      %s182 = smul.addr %s178, 2
      %s183 = sadd.s32 %s181, %s182
      %s184 = smul.addr %s183, 8
      %s185 = scalar_lea.vmem %s2, %s184
      %p186 = pneg %p51
      %p187 = pneg %p48
      %p188 = pneg %p72
      %p189 = pneg %p69
      %p190 = pneg %p93
      %p191 = pneg %p90
      %p192 = pneg %p121
      %p193 = pneg %p118
      %s194 = smul.u32 3, %s21
      %p195 = scmp.lt.s32.totalorder %s20, 1
      %s196 = scalar_select %p195, %s20, 1
      %p197 = scmp.lt.s32.totalorder %s194, 2
      %s198 = scalar_select %p197, %s194, 2
      %s199 = smul.addr %s196, 3
      %s200 = sadd.s32 %s198, %s199
      %s201 = smul.addr %s200, 8
      %s202 = scalar_lea.vmem %s4, %s201
      %s203 = smul.u32 3, %s21
      %s204 = ssub.s32 1, %s203
      %s205 = ssub.s32 3, %s204
      %s206 = smul.u32 128, %s205
      %p207 = scmp.lt.s32.totalorder %s20, 1
      %s208 = scalar_select %p207, %s20, 1
      %s209 = ssub.s32 %s203, 1
      %p210 = scmp.lt.s32.totalorder %s209, 1
      %s211 = scalar_select %p210, %s209, 1
      %s212 = smul.addr %s208, 2
      %s213 = sadd.s32 %s211, %s212
      %s214 = smul.addr %s213, 8
      %s215 = scalar_lea.vmem %s2, %s214
      %s216 = smul.u32 3, %s21
      %s217 = ssub.s32 1, %s216
      %s218 = ssub.s32 3, %s217
      %s219 = smul.u32 128, %s218
      %s220 = smul.u32 3, %s21
      %p221 = scmp.lt.s32.totalorder %s20, 1
      %s222 = scalar_select %p221, %s20, 1
      %p223 = scmp.lt.s32.totalorder %s220, 2
      %s224 = scalar_select %p223, %s220, 2
      %s225 = smul.addr %s222, 3
      %s226 = sadd.s32 %s224, %s225
      %s227 = smul.addr %s226, 8
      %s228 = scalar_lea.vmem %s4, %s227
      %s229 = smul.u32 3, %s21
      %s230 = ssub.s32 %s216, 1
      %p231 = scmp.lt.s32.totalorder %s230, 0
      %s232 = scalar_select %p231, 0, 255
      %v233 = vld [vmem:[%s215] sm:%s232]
      %s234 = ssub.s32 %s216, 1
      %v235 = vstv %s234
      %vm236 = vcmp.lt.s32.totalorder %v235, 0
      %v237 = vsel %vm236, %v9, %v233
      %v238 = vlaneseq
      %v239 = vand.u32 %v238, 127
      %vm241 = vcmp.lt.s32.totalorder %v239, 64
      %v242 = vsel %vm241, %v237, %v9
      %s243 = scalar_lea.vmem %s215, 8
      %v244 = vld [vmem:[%s243] sm:$0xff]
      %v245 = vlaneseq
      %v246 = vand.u32 %v245, 127
      %vm248 = vcmp.lt.s32.totalorder %v246, 64
      %v249 = vsel %vm248, %v244, %v9
      %vm250 = vcmask 1046528
      %v251 = vsel %vm250, %v249, %v242
      %v252 = vrot.slane %v251, 7
      %254 = vst [vmem:[#allocation7] sm:$0xff] %v252
      %s255 = scalar_lea.vmem %s215, 16
      %v256 = vld [vmem:[%s255] sm:$0xff]
      %v257 = vlaneseq
      %v258 = vand.u32 %v257, 127
      %vm260 = vcmp.lt.s32.totalorder %v258, 64
      %v261 = vsel %vm260, %v256, %v9
      %vm262 = vcmask 1046528
      %v263 = vsel %vm262, %v261, %v249
      %v264 = vrot.slane %v263, 7
      %s265 = scalar_lea.vmem [#allocation7], 8
      %267 = vst [vmem:[%s265] sm:$0xff] %v264
      %vm268 = vcmask 1046528
      %v269 = vsel %vm268, %v9, %v261
      %v270 = vrot.slane %v269, 7
      %s271 = scalar_lea.vmem [#allocation7], 16
      %273 = vst [vmem:[%s271] sm:$0xff] %v270
      %v274 = vld [vmem:[#allocation7] sm:$0xff]
      %v275 = vld [vmem:[#allocation7 + $0x8] sm:$0xff]
      %v276 = vld [vmem:[#allocation7 + $0x10] sm:$0x1]
      %v277 = vld [vmem:[%s0] sm:$0xff]
      %v278 = vld [vmem:[%s0 + $0x8] sm:$0xff]
      %v279 = vld [vmem:[%s0 + $0x10] sm:$0xff]
      %v280 = vld [vmem:[%s0 + $0x18] sm:$0xff]
      %v281 = vld [vmem:[%s0 + $0x20] sm:$0xff]
      %v282 = vld [vmem:[%s0 + $0x28] sm:$0xff]
      %v283 = vld [vmem:[%s0 + $0x30] sm:$0xff]
      %v284 = vld [vmem:[%s0 + $0x38] sm:$0xff]
      %s285 = smul.u32 %s21, 17
      %s286 = scalar_lea.vmem %s1, %s285
      %v287 = vld [vmem:[%s286] sm:$0xff]
      %v288 = vld [vmem:[%s286 + $0x8] sm:$0xff]
      %v289 = vld [vmem:[%s286 + $0x10] sm:$0x1]
      %vm290 = vcmask 523264
      %v292 = vsel %vm290, %v274, 0
      %v295 = vsel %vm290, %v275, 0
      %v298 = vsel %vm290, %v276, 0
      %300 = vmatprep.subr.mxu0 0.0
      %301 = vmatpush1.msra.mxu0 %v277
      %302 = vmatprep.subr.mxu0 0.0
      %303 = vmatpush1.msra.mxu0 %v278
      %304 = vmatprep.subr.mxu0 0.0
      %305 = vmatpush1.msra.mxu0 %v279
      %306 = vmatprep.subr.mxu0 0.0
      %307 = vmatpush1.msra.mxu0 %v280
      %308 = vmatprep.subr.mxu0 0.0
      %309 = vmatpush1.msra.mxu0 %v281
      %310 = vmatprep.subr.mxu0 0.0
      %311 = vmatpush1.msra.mxu0 %v282
      %312 = vmatprep.subr.mxu0 0.0
      %313 = vmatpush1.msra.mxu0 %v283
      %314 = vmatprep.subr.mxu0 0.0
      %315 = vmatpush1.msra.mxu0 %v284
      %316 = vmatprep.subr.mxu0 0.0
      %317 = vmatpush1.msra.mxu0 0.0
      %318 = vmatprep.subr.mxu0 0.0
      %319 = vmatpush1.msra.mxu0 0.0
      %320 = vmatprep.subr.mxu0 0.0
      %321 = vmatpush1.msra.mxu0 0.0
      %322 = vmatprep.subr.mxu0 0.0
      %323 = vmatpush1.msra.mxu0 0.0
      %324 = vmatprep.subr.mxu0 0.0
      %325 = vmatpush1.msra.mxu0 0.0
      %326 = vmatprep.subr.mxu0 0.0
      %327 = vmatpush1.msra.mxu0 0.0
      %328 = vmatprep.subr.mxu0 0.0
      %329 = vmatpush1.msra.mxu0 0.0
      %330 = vmatprep.subr.mxu0 0.0
      %331 = vmatpush1.msra.mxu0 0.0
      %332 = vmatprep.subr.mxu0 0.0
      %333 = vmatpush1.msra.mxu0 0.0
      %334 = vmatprep.subr.mxu0 0.0
      %335 = vmatpush1.msra.mxu0 0.0
      %336 = vmatprep.subr.mxu0 0.0
      %337 = vmatpush1.msra.mxu0 0.0
      %338 = vmatprep.subr.mxu0 0.0
      %339 = vmatpush1.msra.mxu0 0.0
      %340 = vmatprep.subr.mxu0 0.0
      %341 = vmatpush1.msra.mxu0 0.0
      %342 = vmatprep.subr.mxu0 0.0
      %343 = vmatpush1.msra.mxu0 0.0
      %344 = vmatprep.subr.mxu0 0.0
      %345 = vmatpush1.msra.mxu0 0.0
      %346 = vmatprep.subr.mxu0 0.0
      %347 = vmatpush1.msra.mxu0 0.0
      %348 = vmatprep.subr.mxu0 0.0
      %349 = vmatpush1.msra.mxu0 0.0
      %350 = vmatprep.subr.mxu0 0.0
      %351 = vmatpush1.msra.mxu0 0.0
      %352 = vmatprep.subr.mxu0 0.0
      %353 = vmatpush1.msra.mxu0 0.0
      %354 = vmatprep.subr.mxu0 0.0
      %355 = vmatpush1.msra.mxu0 0.0
      %356 = vmatprep.subr.mxu0 0.0
      %357 = vmatpush1.msra.mxu0 0.0
      %358 = vmatprep.subr.mxu0 0.0
      %359 = vmatpush1.msra.mxu0 0.0
      %360 = vmatprep.subr.mxu0 0.0
      %361 = vmatpush1.msra.mxu0 0.0
      %362 = vmatprep.subr.mxu0 0.0
      %363 = vmatpush1.msra.mxu0 0.0
      %364 = vmatprep.mubr.f32.mxu0 0.0
      %365 = vmatmul.mubr.f32.gmra.mrb[0].mxu0 %v292
      %v366 = vpop.f32.mrb[0].mxu0
      %v367 = vadd.f32 %v287, %v366
      %v368 = vpop.f32.mrb[0].mxu0
      %369 = vmatprep.mubr.f32.mxu0 0.0
      %370 = vmatmul.mubr.f32.gmra.mrb[0].mxu0 %v295
      %v371 = vpop.f32.mrb[0].mxu0
      %v372 = vadd.f32 %v288, %v371
      %v373 = vpop.f32.mrb[0].mxu0
      %374 = vmatprep.mubr.f32.mxu0 0.0
      %375 = vmatmul.mubr.f32.gmra.mrb[0].mxu0 %v298
      %v376 = vpop.f32.mrb[0].mxu0
      %v377 = vadd.f32 %v289, %v376
      %v378 = vpop.f32.mrb[0].mxu0
      %379 = vdwg.mxu0
      %vm380 = vcmask 261120
      %381 = vst.msk [vmem:[%s228] sm:$0xff] %vm380, %v367
      %382 = vst.msk [vmem:[%s228 + $0x8] sm:$0xff] %vm380, %v372
      %vm383 = vcmask 253952
      %384 = vst.msk [vmem:[%s228 + $0x10] sm:$0x1] %vm383, %v377
      %s385 = smul.u32 3, %s21
      %p386 = scmp.lt.s32.totalorder %s20, 1
      %s387 = scalar_select %p386, %s20, 1
      %p388 = scmp.lt.s32.totalorder %s385, 2
      %s389 = scalar_select %p388, %s385, 2
      %s390 = smul.addr %s387, 3
      %s391 = sadd.s32 %s389, %s390
      %s392 = smul.addr %s391, 8
      %s393 = scalar_lea.vmem %s4, %s392
      // Predicated region
      $region33: #{patch_embedding.2} parent=31 // pred_check
        %p394 = pneg %p118
      $region34: #{patch_embedding.2} parent=31 // pred_check_branch
        %396 = sbr.rel (%p394) target = $region36
      $region35: #{patch_embedding.2} parent=31 // pred_region
        %s397 = smul.u32 3, %s21
      $region36: #{patch_embedding.2} parent=31 // pred_fallthru
        _
    $region32: #{patch_embedding.2} parent=5 // pred_fallthru
      _
    %p398 = scmp.le.s32.totalorder 2, %s11
    // Predicated region
    $region37: #{patch_embedding.2} parent=5 // pred_check
      %p399 = pneg %p398
    $region38: #{patch_embedding.2} parent=5 // pred_check_branch
      %401 = sbr.rel (%p399) target = $region40
    $region39: #{patch_embedding.2} parent=5 // pred_region
      %s402 = ssub.s32 %s11, 2
      // Predicated region
      $region41: #{patch_embedding.2} parent=39 // pred_check
        %p403 = pneg %p124
      $region42: #{patch_embedding.2} parent=39 // pred_check_branch
        %405 = sbr.rel (%p403) target = $region44
      $region43: #{patch_embedding.2} parent=39 // pred_region
        %s406 = smul.u32 3, %s23
        %p407 = scmp.lt.s32.totalorder %s22, 1
        %s408 = scalar_select %p407, %s22, 1
        %p409 = scmp.lt.s32.totalorder %s406, 2
        %s410 = scalar_select %p409, %s406, 2
        %s411 = smul.addr %s408, 3
        %s412 = sadd.s32 %s410, %s411
        %s413 = smul.addr %s412, 8
        %s414 = scalar_lea.vmem %s4, %s413
      $region44: #{patch_embedding.2} parent=39 // pred_fallthru
        _
    $region40: #{patch_embedding.2} parent=5 // pred_fallthru
      _
  $region6: #{patch_embedding.2} parent=0 // loop_footer
    %s15 = sadd.s32 1, %s11
  $region7: #{patch_embedding.2} parent=0 // loop_footer_branch
    %10 = sbr.rel target = $region3
  $region8: #{patch_embedding.2} parent=0 // loop_exit
    _

</llo_original>
